<compile_context>
chip_gen: v5e
topology: v5e:2x2
jax: 0.10.0
libtpu: 0.0.40
codegen_flags: <defaults>
</compile_context>

<pallas_src>
import jax
import jax.numpy as jnp
from jax.experimental import pallas as pl
from jax.experimental.pallas import tpu as pltpu

_LANES = 128


def hytana_kernel(x_ref, o_ref):
    """f(x) = x * tanh(softplus(x)) via the rational form tanh(sp(x)) = t/(t+2)."""
    x = x_ref[...].astype(jnp.float32)
    # t = e^x * (e^x + 2); clamp before exp to avoid f32 overflow — exact, since
    # the gate is already 1.0 (to f32 precision) well below x = 20.
    w = jnp.exp(jnp.minimum(x, 20.0))
    t = w * (w + 2.0)
    # Form the (0, 1) gate BEFORE multiplying by x (no overflowing intermediate).
    gate = t * pl.reciprocal(t + 2.0, approx=True)
    o_ref[...] = (x * gate).astype(o_ref.dtype)


def _round_up(a: int, m: int) -> int:
    return ((a + m - 1) // m) * m


def _cdiv(a: int, m: int) -> int:
    return (a + m - 1) // m


def _vmem_capacity_bytes() -> int:
    try:
        return int(pltpu.get_tpu_info().vmem_capacity_bytes)
    except Exception:
        return 64 << 20  # conservative (v7x-sized) fallback


def hytana(x):
    """Pallas-backed Hytana forward. Accepts any shape (e.g. NCHW)."""
    orig_shape = x.shape
    orig_dtype = x.dtype
    itemsize = jnp.dtype(orig_dtype).itemsize

    n = int(x.size)
    if n == 0:
        return x

    rows = _cdiv(n, _LANES)
    padded_n = rows * _LANES
    needs_pad = padded_n != n

    if needs_pad:
        # See module-level TODO(synk): pad + final slice cost 2 extra HBM passes.
        flat = jnp.pad(x.reshape(n), (0, padded_n - n))
        x2d = flat.reshape(rows, _LANES)
    else:
        # Lane-aligned: reshape-only view, no extra HBM traffic.
        x2d = x.reshape(rows, _LANES)

    # ---- Block sizing: byte-targeted, dtype- and generation-aware -----------
    # Packed-sublane multiple: 8 for 4-byte, 16 for 2-byte, 32 for 1-byte dtypes.
    sublane_mult = max(8, 32 // max(itemsize, 1))
    vmem_cap = _vmem_capacity_bytes()
    # ~8 MiB per block buffer where VMEM is roomy (v5e/v6e: 128 MiB physical),
    # ~4 MiB where it is not (v7x: 64 MiB physical).
    target_block_bytes = (8 << 20) if vmem_cap >= (100 << 20) else (4 << 20)
    target_rows = max(
        sublane_mult,
        (target_block_bytes // (_LANES * itemsize)) // sublane_mult * sublane_mult,
    )

    if rows <= 2 * sublane_mult:
        # Tiny tensor: one full-extent block (always a legal block shape).
        block_rows = rows
    else:
        # Target ~8 grid steps so the pipeline hides prologue/epilogue DMAs and
        # both v7x TensorCores get several blocks; cap at the byte target.
        split = _round_up(_cdiv(rows, 8), sublane_mult)
        block_rows = max(sublane_mult, min(target_rows, split))

    grid = (_cdiv(rows, block_rows),)  # tail block (if any) is masked by Pallas

    # VMEM budget: in+out, double-buffered, plus slack; capped below physical.
    block_bytes = block_rows * _LANES * itemsize
    vmem_limit = int(min(max(32 << 20, 4 * block_bytes + (8 << 20)),
                         (vmem_cap * 3) // 4))

    cost = pl.CostEstimate(
        flops=7 * padded_n,
        transcendentals=2 * padded_n,
        bytes_accessed=2 * padded_n * itemsize,
    )

    out2d = pl.pallas_call(
        hytana_kernel,
        out_shape=jax.ShapeDtypeStruct((rows, _LANES), orig_dtype),
        grid_spec=pltpu.PrefetchScalarGridSpec(
            num_scalar_prefetch=0,
            grid=grid,
            in_specs=[pl.BlockSpec((block_rows, _LANES), lambda i: (i, 0))],
            out_specs=pl.BlockSpec((block_rows, _LANES), lambda i: (i, 0)),
        ),
        compiler_params=pltpu.CompilerParams(
            dimension_semantics=("parallel",),
            vmem_limit_bytes=vmem_limit,
        ),
        cost_estimate=cost,
    )(x2d)

    if needs_pad:
        return out2d.reshape(padded_n)[:n].reshape(orig_shape)
    return out2d.reshape(orig_shape)


class Hytana:
    """Mirror of the torch.nn.Module wrapper (inference forward only)."""

    def __init__(self, inplace: bool = False):
        self.inplace = inplace  # no-op in JAX (functional)

    def __call__(self, x):
        return hytana(x)


def _reference(x):
    xf = x.astype(jnp.float32)
    return (xf * jnp.tanh(jax.nn.softplus(xf))).astype(x.dtype)


def _check(x, rtol, atol):
    y = jax.block_until_ready(hytana(x))
    y_ref = _reference(x)
    assert y.shape == x.shape and y.dtype == x.dtype
    assert jnp.allclose(y, y_ref, atol=atol, rtol=rtol), "mismatch vs reference"


if __name__ == "__main__":
    key = jax.random.PRNGKey(0)
    # Tolerance note: the kernel uses the EUP approximate reciprocal, so allow
    # a small relative slack vs. the exact-division reference.
    RTOL, ATOL = 5e-3, 1e-5

    k0, k1, k2, k3 = jax.random.split(key, 4)
    mod = Hytana()

    # NCHW input, PyTorch convention: batch=2, channels=4, spatial=16x16
    # (2048 elems -> aligned path, 16 rows, single full-extent block).
    x = jax.random.normal(k0, (2, 4, 16, 16), dtype=jnp.float32) * 3.0
    _check(x, RTOL, ATOL)

    # Masked-tail path: 17 rows -> 8-row blocks, grid 3, last block masked.
    x_tail = jax.random.normal(k1, (1, 1, 17, 128), dtype=jnp.float32) * 3.0
    _check(x_tail, RTOL, ATOL)

    # Non-lane-aligned path: 1155 elems -> padded to 10 rows x 128 lanes.
    x_odd = jax.random.normal(k2, (3, 5, 7, 11), dtype=jnp.float32) * 3.0
    _check(x_odd, RTOL, ATOL)

    # bf16 I/O path (exercises dtype-aware sublane packing / block sizing).
    x_bf16 = (jax.random.normal(k3, (2, 4, 16, 16), dtype=jnp.float32) * 3.0
              ).astype(jnp.bfloat16)
    _check(x_bf16, 2e-2, 1e-2)

    print("KERNEL_OK")
</pallas_src>

<mosaic_0001>
module attributes {stable_mosaic.version = 11 : i64} {
  func.func @hytana_kernel(%arg0: i32, %arg1: memref<16x128xf32, #tpu.memory_space<vmem>>, %arg2: memref<16x128xf32, #tpu.memory_space<vmem>>) attributes {dimension_semantics = [#tpu.dimension_semantics<parallel>], iteration_bounds = array<i64: 1>, scalar_prefetch = 0 : i64, scratch_operands = 0 : i64, tpu.core_type = #tpu.core_type<tc>, window_params = [{transform_indices = @transform_0, window_bounds = array<i64: 16, 128>}, {transform_indices = @transform_1, window_bounds = array<i64: 16, 128>}]} {
    %c0 = arith.constant 0 : index
    %c0_0 = arith.constant 0 : index
    %0 = vector.load %arg1[%c0, %c0_0] : memref<16x128xf32, #tpu.memory_space<vmem>>, vector<16x128xf32>
    %cst = arith.constant 2.000000e+01 : f32
    %1 = vector.broadcast %cst : f32 to vector<16x128xf32>
    %2 = arith.minimumf %0, %1 : vector<16x128xf32>
    %3 = math.exp %2 : vector<16x128xf32>
    %cst_1 = arith.constant 2.000000e+00 : f32
    %4 = vector.broadcast %cst_1 : f32 to vector<16x128xf32>
    %5 = arith.addf %3, %4 : vector<16x128xf32>
    %6 = arith.mulf %3, %5 : vector<16x128xf32>
    %cst_2 = arith.constant 2.000000e+00 : f32
    %7 = vector.broadcast %cst_2 : f32 to vector<16x128xf32>
    %8 = arith.addf %6, %7 : vector<16x128xf32>
    %9 = tpu.reciprocal %8 {approx = true} : vector<16x128xf32> -> vector<16x128xf32>
    %10 = arith.mulf %6, %9 : vector<16x128xf32>
    %11 = arith.mulf %0, %10 : vector<16x128xf32>
    %c0_3 = arith.constant 0 : index
    %c0_4 = arith.constant 0 : index
    %12 = vector.load %arg2[%c0_3, %c0_4] : memref<16x128xf32, #tpu.memory_space<vmem>>, vector<16x128xf32>
    tpu.vector_store %arg2[%c0_3, %c0_4], %11 {strides = array<i32>} : memref<16x128xf32, #tpu.memory_space<vmem>>, vector<16x128xf32>,
    return
  }
  func.func @transform_0(%arg0: i32) -> (i32, i32) {
    %c0_i32 = arith.constant 0 : i32
    %c0_i32_0 = arith.constant 0 : i32
    return %arg0, %c0_i32 : i32, i32
  }
  func.func @transform_1(%arg0: i32) -> (i32, i32) {
    %c0_i32 = arith.constant 0 : i32
    %c0_i32_0 = arith.constant 0 : i32
    return %arg0, %c0_i32 : i32, i32
  }
}

</mosaic_0001>

<llo_original>
// kernel: tpu_custom_call.1
$region0: #{tpu_custom_call.1}
  #allocation0 [shape = 'u32[]', space=smem, size = 0x4, offset = 0x4, fixed_abs, tag = 'smem constant byte address 0x4 - core index']
  #allocation1 [shape = 'u32[72,128]{1,0:T(1,128)}', space=vmem, size = 0x9000, scoped, tag = 'internal scratch']
  %s0 = inlined_call_operand.hbm [shape: f32[16,128], index: 0, kind: input, shape index: {}]
  %s1 = inlined_call_operand.hbm [shape: f32[16,128], index: 1, kind: output, shape index: {}]
  %s2 = sld [smem:[#allocation0]]
  $region18: #{tpu_custom_call.1} parent=0
    _
  %s4 = ssub.s32 1, %s2
  %s5 = scalar_select 0, %s4, %s2
  $region1: #{tpu_custom_call.1} parent=0
    #allocation2 [shape = 'u8[8192]{0}', space=vmem, size = 0x2000, scoped, tag = 'input window, operand 0, single buffered']
    #allocation3 [shape = 's32[1]{0}', space=sflag, size = 0x4, scoped, tag = 'scoped memory for tpu_custom_call.1']
    #allocation4 [shape = 's32[1]{0}', space=sflag, size = 0x4, scoped, tag = 'scoped memory for tpu_custom_call.1']
    #allocation5 [shape = 'u8[8192]{0}', space=vmem, size = 0x2000, scoped, tag = 'output window, operand 0, single buffered']
    %6 = vsyncpa [#allocation3], 0
    %7 = vsyncpa [#allocation4], 0
    // Predicated region
    $region2: #{tpu_custom_call.1} parent=1 // pred_check
      _
    $region3: #{tpu_custom_call.1} parent=1 // pred_check_branch
      %9 = sbr.rel (0) target = $region5
    $region4: #{tpu_custom_call.1} parent=1 // pred_region
      %11 = vsyncadd [#allocation3], 0
      %s12 = sshll.u32 %s0, 4
      %s13 = int_to_ptr.hbm [resolvable:$true] %s12
      %s14 = sshll.u32 [#allocation2], 4
      %s15 = int_to_ptr.vmem [resolvable:$true] %s14
      %20 = dma.hbm_to_vmem [thread:$0]  %s13, 256, %s15, [#allocation3], 128, 128, 8
    $region5: #{tpu_custom_call.1} parent=1 // pred_fallthru
      _
    // Predicated region
    $region6: #{tpu_custom_call.1} parent=1 // pred_check
      _
    $region7: #{tpu_custom_call.1} parent=1 // pred_check_branch
      %22 = sbr.rel (0) target = $region9
    $region8: #{tpu_custom_call.1} parent=1 // pred_region
      %24 = dma.done [#allocation3], 256
    $region9: #{tpu_custom_call.1} parent=1 // pred_fallthru
      _
    %v25 = vld [vmem:[#allocation2] sm:$0xff]
    %v26 = vld [vmem:[#allocation2 + $0x8] sm:$0xff]
    %v27 = vmin.f32 %v25, 20.0
    %v28 = vmin.f32 %v26, 20.0
    %v29 = vmul.f32 %v27, 1.442695
    %v30 = vpow.pop %v29
    %v31 = vmul.f32 %v28, 1.442695
    %v32 = vpow.pop %v31
    %v33 = vadd.f32 %v30, 2.0
    %v34 = vadd.f32 %v32, 2.0
    %v35 = vmul.f32 %v30, %v33
    %v36 = vmul.f32 %v32, %v34
    %v37 = vadd.f32 %v35, 2.0
    %v38 = vadd.f32 %v36, 2.0
    %v39 = vrcp.pop %v37
    %v40 = vrcp.pop %v38
    %v41 = vmul.f32 %v35, %v39
    %v42 = vmul.f32 %v36, %v40
    %v43 = vmul.f32 %v25, %v41
    %v44 = vmul.f32 %v26, %v42
    %45 = vst [vmem:[#allocation5] sm:$0xff] %v43
    %46 = vst [vmem:[#allocation5 + $0x8] sm:$0xff] %v44
    // Predicated region
    $region10: #{tpu_custom_call.1} parent=1 // pred_check
      _
    $region11: #{tpu_custom_call.1} parent=1 // pred_check_branch
      %48 = sbr.rel (0) target = $region13
    $region12: #{tpu_custom_call.1} parent=1 // pred_region
      %50 = vsyncadd [#allocation4], 0
      %s51 = sshll.u32 [#allocation5], 4
      %s52 = int_to_ptr.vmem [resolvable:$true] %s51
      %s53 = sshll.u32 %s1, 4
      %s54 = int_to_ptr.hbm [resolvable:$true] %s53
      %59 = dma.vmem_to_hbm [thread:$0]  %s52, 256, %s54, [#allocation4], 128, 128, 8
    $region13: #{tpu_custom_call.1} parent=1 // pred_fallthru
      _
    // Predicated region
    $region14: #{tpu_custom_call.1} parent=1 // pred_check
      _
    $region15: #{tpu_custom_call.1} parent=1 // pred_check_branch
      %61 = sbr.rel (0) target = $region17
    $region16: #{tpu_custom_call.1} parent=1 // pred_region
      %63 = dma.done [#allocation4], 256
    $region17: #{tpu_custom_call.1} parent=1 // pred_fallthru
      _
    %64 = vsyncpa [#allocation3], 1
    %65 = vsyncpa [#allocation4], 1

</llo_original>
